<compile_context>
chip_gen: v7x
topology: tpu7x:2x2x1
jax: 0.10.0
libtpu: 0.0.40
codegen_flags: <defaults>
</compile_context>

<pallas_src>
import math
import functools

import jax
import jax.numpy as jnp
from jax import lax
from jax.experimental import pallas as pl
from jax.experimental.pallas import tpu as pltpu


# ----------------------------------------------------------------------------
# Shared in-kernel helpers (kernel 1)
# ----------------------------------------------------------------------------
def _prefix_mask(len_col, TB, R, L):
    """len_col: [TB,1] int32 valid lengths.  Returns bool [TB, R] selecting,
    for each user b, the first len_col[b] positions of its L-slot segment."""
    r_idx = lax.broadcasted_iota(jnp.int32, (TB, R), 1)
    b_idx = lax.broadcasted_iota(jnp.int32, (TB, R), 0)
    member = jnp.logical_and(r_idx >= b_idx * L, r_idx < (b_idx + 1) * L)
    pos = r_idx - b_idx * L
    return jnp.logical_and(member, pos < len_col)


def _pool_users(h, M, a, b_row):
    """h: [R,D] gathered entity rows, M: [TB,R] validity mask, a: [D,Da],
    b_row: [1,Da].  Softmax-attention pooling per user (zeros if no valid
    entity), matching the torch SelfAttentionLayer + valid_num==0 branch."""
    t = jnp.tanh(jnp.dot(h, a, preferred_element_type=jnp.float32))      # [R,Da]
    # Per-row scores produced directly in lane-dense row form: [1, R].
    e_row = lax.dot_general(b_row, t, (((1,), (1,)), ((), ())),
                            preferred_element_type=jnp.float32)
    neg = jnp.float32(-1e30)
    e_m = jnp.where(M, e_row, neg)                                       # [TB,R]
    m_user = jnp.max(e_m, axis=-1, keepdims=True)                        # per-user max
    p = jnp.exp(e_m - m_user) * M.astype(jnp.float32)                    # [TB,R]
    den = jnp.sum(p, axis=-1, keepdims=True)                             # [TB,1]
    num = jnp.dot(p, h, preferred_element_type=jnp.float32)              # [TB,D]
    inv = jnp.where(den > 0, 1.0 / jnp.where(den > 0, den, 1.0), 0.0)
    return num * inv


# ----------------------------------------------------------------------------
# Kernel 1a: node table resident in VMEM, gather via one-hot MXU matmul.
# ----------------------------------------------------------------------------
def _attn_pool_resident_kernel(ids_ref, lens_ref, nodes_ref, a_ref, b_ref, o_ref):
    TB, _ = o_ref.shape
    R = ids_ref.shape[0]
    L = R // TB
    N = nodes_ref.shape[0]

    ids_col = ids_ref[...]                                              # [R,1] i32
    n_iota = lax.broadcasted_iota(jnp.int32, (R, N), 1)
    onehot = (n_iota == ids_col).astype(jnp.float32)                    # [R,N]
    h = jnp.dot(onehot, nodes_ref[...],
                preferred_element_type=jnp.float32)                     # [R,D]

    M = _prefix_mask(lens_ref[...], TB, R, L)
    o_ref[...] = _pool_users(h, M, a_ref[...], b_ref[...])


# ----------------------------------------------------------------------------
# Kernel 1b: large table fallback -- per-row DMA gather from HBM,
#            double-buffered across batch tiles (prefetch tile g+1).
# ----------------------------------------------------------------------------
def _attn_pool_dma_kernel(ids_ref, lens_ref, a_ref, b_ref, nodes_ref, o_ref,
                          hbuf, sem):
    g = pl.program_id(0)
    n_tiles = pl.num_programs(0)
    TB, _ = o_ref.shape
    _, R, _ = hbuf.shape
    L = R // TB

    def start_gather(tile, slot):
        base = tile * R
        for i in range(R):                        # static unroll, R modest
            row = ids_ref[base + i]               # SMEM scalar read
            pltpu.make_async_copy(nodes_ref.at[pl.ds(row, 1), :],
                                  hbuf.at[slot, pl.ds(i, 1), :],
                                  sem.at[slot]).start()

    def wait_gather(slot):
        for i in range(R):
            pltpu.make_async_copy(nodes_ref.at[pl.ds(0, 1), :],
                                  hbuf.at[slot, pl.ds(i, 1), :],
                                  sem.at[slot]).wait()

    slot = lax.rem(g, 2)

    @pl.when(g == 0)
    def _():
        start_gather(0, 0)

    @pl.when(g + 1 < n_tiles)
    def _():
        start_gather(g + 1, 1 - slot)             # prefetch next batch tile

    wait_gather(slot)
    h = hbuf[slot]                                # [R, D]
    M = _prefix_mask(lens_ref[...], TB, R, L)
    o_ref[...] = _pool_users(h, M, a_ref[...], b_ref[...])


def self_attention_pool(nodes, input_ids, attention_mask, attn_a, attn_b, *,
                        target_rows=256, resident_max_entities=2048,
                        resident_table_budget=16 << 20):
    """nodes: [N, D], input_ids: [B, L] int, attention_mask: [B, L] bool
       -> pooled user embeddings [B, D] float32."""
    B, L = input_ids.shape
    N, D = nodes.shape
    Da = attn_a.shape[1]

    # torch semantics: each user pools its FIRST valid_num entity mentions.
    lengths = jnp.sum(attention_mask.astype(jnp.int32), axis=-1)        # [B]

    # Batch-tile size: amortize per-step overhead, keep (8,128) tiling legal.
    tgt_tb = max(1, target_rows // L)
    TB = B if B <= tgt_tb else max(8, (tgt_tb // 8) * 8)
    G = (B + TB - 1) // TB
    Bp = G * TB
    R = TB * L

    ids = jnp.clip(input_ids.astype(jnp.int32), 0, N - 1)   # never gather OOB
    if Bp != B:
        ids = jnp.pad(ids, ((0, Bp - B), (0, 0)))
        lengths = jnp.pad(lengths, (0, Bp - B))
    ids_col = ids.reshape(Bp * L, 1)
    lens_col = lengths.reshape(Bp, 1)
    b_row = attn_b.reshape(1, Da)

    use_resident = (N <= resident_max_entities and
                    2 * N * D * 4 <= resident_table_budget)

    if use_resident:
        est = (2 * N * D * 4 + 2 * R * 4 + 2 * TB * 4 + 2 * TB * D * 4
               + 2 * (D * Da + Da) * 4
               + R * N * 4 + 3 * R * max(D, Da) * 4 + 4 * TB * R * 4)
        vmem_cap = int(min(48 << 20, max(16 << 20, 2 * est)))
        out = pl.pallas_call(
            _attn_pool_resident_kernel,
            out_shape=jax.ShapeDtypeStruct((Bp, D), jnp.float32),
            grid=(G,),
            in_specs=[
                pl.BlockSpec((R, 1), lambda g: (g, 0)),     # entity ids column
                pl.BlockSpec((TB, 1), lambda g: (g, 0)),    # per-user lengths
                pl.BlockSpec((N, D), lambda g: (0, 0)),     # node table resident
                pl.BlockSpec((D, Da), lambda g: (0, 0)),    # attn a
                pl.BlockSpec((1, Da), lambda g: (0, 0)),    # attn b (row)
            ],
            out_specs=pl.BlockSpec((TB, D), lambda g: (g, 0)),
            compiler_params=pltpu.CompilerParams(
                dimension_semantics=("parallel",),
                vmem_limit_bytes=vmem_cap),
        )(ids_col, lens_col, nodes, attn_a, b_row)
        return out[:B]

    # Large table: nodes stay in HBM; rows gathered by DMA, double-buffered
    # across batch tiles.  Cross-step prefetch needs sequential grid order,
    # hence "arbitrary" semantics here.
    ids_flat = ids.reshape(Bp * L)
    est = (4 * R * D * 4 + 2 * TB * D * 4 + 2 * (D * Da + Da) * 4
           + 3 * R * max(D, Da) * 4 + 4 * TB * R * 4 + 2 * TB * 4)
    vmem_cap = int(min(64 << 20, max(16 << 20, 2 * est)))
    grid_spec = pltpu.PrefetchScalarGridSpec(
        num_scalar_prefetch=1,
        grid=(G,),
        in_specs=[
            pl.BlockSpec((TB, 1), lambda g, ids: (g, 0)),   # per-user lengths
            pl.BlockSpec((D, Da), lambda g, ids: (0, 0)),
            pl.BlockSpec((1, Da), lambda g, ids: (0, 0)),
            pl.BlockSpec(memory_space=pl.ANY),              # nodes in HBM
        ],
        out_specs=pl.BlockSpec((TB, D), lambda g, ids: (g, 0)),
        scratch_shapes=[
            pltpu.VMEM((2, R, D), jnp.float32),
            pltpu.SemaphoreType.DMA((2,)),
        ],
    )
    out = pl.pallas_call(
        _attn_pool_dma_kernel,
        out_shape=jax.ShapeDtypeStruct((Bp, D), jnp.float32),
        grid_spec=grid_spec,
        compiler_params=pltpu.CompilerParams(
            dimension_semantics=("arbitrary",),
            vmem_limit_bytes=vmem_cap),
    )(ids_flat, lens_col, attn_a, b_row, nodes)
    return out[:B]


# ----------------------------------------------------------------------------
# Kernel 2: output logits = u @ nodes^T + bias   (bandwidth-bound)
#   node rows streamed as [tn, D] bf16 tiles (no host-side transpose / pad of
#   the full table), f32 accumulation, u & bias tile math in f32.
# ----------------------------------------------------------------------------
def _output_logits_kernel(u_ref, w_ref, b_ref, o_ref):
    acc = lax.dot_general(u_ref[...], w_ref[...], (((1,), (1,)), ((), ())),
                          preferred_element_type=jnp.float32)
    o_ref[...] = acc + b_ref[...]


def _pick_tile_n(n_pad, max_tn=2048):
    nb = n_pad // 128
    if nb <= 1:
        return 128
    kmax = min(max_tn // 128, max(1, nb // 2))   # prefer >=2 grid steps (v7x)
    k = 1
    for cand in range(1, kmax + 1):
        if nb % cand == 0:
            k = cand
    return 128 * k


def output_logits(u, nodes, bias):
    """u: [B, D] f32, nodes: [N, D] f32, bias: [N] f32 -> logits [B, N] f32."""
    B, D = u.shape
    N, _ = nodes.shape
    N_pad = ((N + 127) // 128) * 128
    tn = _pick_tile_n(N_pad)
    G = N_pad // tn

    w = nodes
    b2 = bias
    if N_pad != N:                               # pad only up to 127 rows
        w = jnp.pad(w, ((0, N_pad - N), (0, 0)))
        b2 = jnp.pad(b2, (0, N_pad - N))
    # bf16 streaming of the dominant HBM traffic (cast typically fuses into
    # the RGCN epilogue); f32 accumulation preserves logits to ~1e-4 abs.
    w = w.astype(jnp.bfloat16)
    u_b = u.astype(jnp.bfloat16)
    b2 = b2.reshape(1, N_pad)

    est = 2 * tn * D * 2 + 2 * B * tn * 4 + 2 * tn * 4 + B * D * 2
    vmem_cap = int(min(32 << 20, max(8 << 20, 2 * est + (2 << 20))))

    out = pl.pallas_call(
        _output_logits_kernel,
        out_shape=jax.ShapeDtypeStruct((B, N_pad), jnp.float32),
        grid=(G,),
        in_specs=[
            pl.BlockSpec((B, D), lambda j: (0, 0)),     # u resident
            pl.BlockSpec((tn, D), lambda j: (j, 0)),    # streamed node rows
            pl.BlockSpec((1, tn), lambda j: (0, j)),    # bias tile
        ],
        out_specs=pl.BlockSpec((B, tn), lambda j: (0, j)),
        compiler_params=pltpu.CompilerParams(
            dimension_semantics=("parallel",),
            vmem_limit_bytes=vmem_cap),
    )(u_b, w, b2)
    return out[:, :N]


# ----------------------------------------------------------------------------
# RGCN node features (x = None): vectorized segment_sum over sorted
# (dst, relation) segments.  Plain-JAX glue.
# ----------------------------------------------------------------------------
def rgcn_node_features(params, edge_idx, edge_type, n_entity, n_rel):
    basis = params["basis"]                              # [num_bases, N, D]
    comp = params["comp"]                                # [n_rel, num_bases]
    src, dst = edge_idx[0], edge_idx[1]

    seg = dst * n_rel + edge_type
    # TODO(synk): in production, sort the (static) graph offline instead.
    order = jnp.argsort(seg)
    src, seg, et = src[order], seg[order], edge_type[order]

    comp_e = comp[et]                                    # [E, num_bases]
    basis_src = basis[:, src, :]                         # [num_bases, E, D]
    msg = jnp.einsum("eb,bed->ed", comp_e, basis_src)    # [E, D]

    summed = jax.ops.segment_sum(msg, seg, num_segments=n_entity * n_rel,
                                 indices_are_sorted=True)
    cnt = jax.ops.segment_sum(jnp.ones(seg.shape, jnp.float32), seg,
                              num_segments=n_entity * n_rel,
                              indices_are_sorted=True)
    mean = summed / jnp.maximum(cnt, 1.0)[:, None]       # [N*n_rel, D]
    agg = mean.reshape(n_entity, n_rel, -1).sum(axis=1)
    return params["root"] + agg + params["rgcn_bias"][None, :]


# ----------------------------------------------------------------------------
# Full KBRD forward
# ----------------------------------------------------------------------------
def kbrd_forward(params, input_ids, attention_mask, n_entity, sub_n_relation):
    nodes = rgcn_node_features(params, params["edge_idx"], params["edge_type"],
                               n_entity, sub_n_relation)
    u_emb = self_attention_pool(nodes, input_ids, attention_mask,
                                params["attn_a"], params["attn_b"])      # [B, D]
    return output_logits(u_emb, nodes, params["out_bias"])               # [B, N]


# ----------------------------------------------------------------------------
# Pure-JAX reference (torch semantics), for the correctness check
# ----------------------------------------------------------------------------
def reference_forward(params, input_ids, attention_mask, n_entity, sub_n_relation):
    nodes = rgcn_node_features(params, params["edge_idx"], params["edge_type"],
                               n_entity, sub_n_relation)
    N, D = nodes.shape
    B, L = input_ids.shape
    lengths = jnp.sum(attention_mask.astype(jnp.int32), axis=-1)
    mask = jnp.arange(L, dtype=jnp.int32)[None, :] < lengths[:, None]
    h = nodes[jnp.clip(input_ids.astype(jnp.int32), 0, N - 1)]           # [B,L,D]
    t = jnp.tanh(jnp.einsum("bld,da->bla", h, params["attn_a"]))
    e = jnp.einsum("bla,ak->blk", t, params["attn_b"])[..., 0]           # [B,L]
    e = jnp.where(mask, e, -1e30)
    p = jax.nn.softmax(e, axis=-1) * mask.astype(jnp.float32)
    u = jnp.einsum("bl,bld->bd", p, h)
    u = jnp.where(lengths[:, None] > 0, u, 0.0)
    return u @ nodes.T + params["out_bias"][None, :]


# ----------------------------------------------------------------------------
# Deterministic parameter init (mirrors module shapes)
# ----------------------------------------------------------------------------
def xavier_uniform(key, shape, gain):
    fan_in, fan_out = shape
    bound = gain * math.sqrt(6.0 / (fan_in + fan_out))
    return jax.random.uniform(key, shape, jnp.float32, -bound, bound)


if __name__ == "__main__":
    n_entity, dim = 128, 32
    sub_n_relation, num_bases = 3, 2
    B, L, E = 2, 8, 64

    key = jax.random.PRNGKey(0)
    k = jax.random.split(key, 12)

    params = {
        # SelfAttentionLayer: a [dim, da], b [da, 1] (da == dim), xavier gain 1.414
        "attn_a": xavier_uniform(k[0], (dim, dim), 1.414),
        "attn_b": xavier_uniform(k[1], (dim, 1), 1.414),
        # output Linear(dim, n_entity): only its bias is used in forward
        "out_bias": jax.random.uniform(
            k[2], (n_entity,), jnp.float32,
            -1.0 / math.sqrt(dim), 1.0 / math.sqrt(dim)),
        # RGCNConv(n_entity, dim, sub_n_relation, num_bases)
        "basis": jax.random.normal(k[3], (num_bases, n_entity, dim), jnp.float32) * 0.02,
        "comp": jax.random.normal(k[4], (sub_n_relation, num_bases), jnp.float32),
        "root": jax.random.normal(k[5], (n_entity, dim), jnp.float32) * 0.02,
        "rgcn_bias": jnp.zeros((dim,), jnp.float32),
        # graph (non-trainable buffers in the module)
        "edge_idx": jax.random.randint(k[6], (2, E), 0, n_entity, dtype=jnp.int32),
        "edge_type": jax.random.randint(k[7], (E,), 0, sub_n_relation, dtype=jnp.int32),
    }
    # NOTE: entity_emb / relation_emb exist in __init__ but are unused in forward.

    input_ids = jax.random.randint(k[8], (B, L), 0, n_entity, dtype=jnp.int32)
    attention_mask = jnp.array(
        [[True] * 5 + [False] * (L - 5),   # 5 valid mentions
         [False] * L],                     # zero-valid row -> zero user emb
        dtype=jnp.bool_)

    fwd = jax.jit(functools.partial(kbrd_forward, n_entity=n_entity,
                                    sub_n_relation=sub_n_relation))
    logits = jax.block_until_ready(fwd(params, input_ids, attention_mask))

    ref = reference_forward(params, input_ids, attention_mask,
                            n_entity, sub_n_relation)

    assert logits.shape == (B, n_entity)
    assert bool(jnp.all(jnp.isfinite(logits)))
    # matches the pure-JAX torch-semantics reference (bf16-streamed table)
    assert bool(jnp.allclose(logits, ref, rtol=2e-2, atol=5e-3))
    # zero-valid row must reduce to exactly the output bias
    assert bool(jnp.allclose(logits[1], params["out_bias"], atol=1e-5))
    print("KERNEL_OK")
</pallas_src>

<mosaic_0001>
module attributes {stable_mosaic.version = 11 : i64} {
  func.func private @main(%arg0: i32) attributes {dimension_semantics = [#tpu.dimension_semantics<core_parallel>], iteration_bounds = array<i64: 2>, tpu.core_type = #tpu.core_type<sc_scalar_subcore>, window_params = []} {
    return
  }
}

module attributes {stable_mosaic.version = 11 : i64} {
  func.func private @main(%arg0: i32) attributes {dimension_semantics = [#tpu.dimension_semantics<core_parallel>], iteration_bounds = array<i64: 2>, tpu.core_type = #tpu.core_type<sc_scalar_subcore>, window_params = []} {
    return
  }
}

module attributes {stable_mosaic.version = 11 : i64} {
  func.func @_attn_pool_resident_kernel(%arg0: i32, %arg1: memref<16x1xi32, #tpu.memory_space<vmem>>, %arg2: memref<2x1xi32, #tpu.memory_space<vmem>>, %arg3: memref<128x32xf32, #tpu.memory_space<vmem>>, %arg4: memref<32x32xf32, #tpu.memory_space<vmem>>, %arg5: memref<1x32xf32, #tpu.memory_space<vmem>>, %arg6: memref<2x32xf32, #tpu.memory_space<vmem>>) attributes {dimension_semantics = [#tpu.dimension_semantics<parallel>], iteration_bounds = array<i64: 1>, scalar_prefetch = 0 : i64, scratch_operands = 0 : i64, tpu.core_type = #tpu.core_type<tc>, window_params = [{transform_indices = @transform_0, window_bounds = array<i64: 16, 1>}, {transform_indices = @transform_1, window_bounds = array<i64: 2, 1>}, {pipeline_mode = #tpu.pipeline_mode<synchronous>, transform_indices = @transform_2, window_bounds = array<i64: 128, 32>}, {pipeline_mode = #tpu.pipeline_mode<synchronous>, transform_indices = @transform_3, window_bounds = array<i64: 32, 32>}, {pipeline_mode = #tpu.pipeline_mode<synchronous>, transform_indices = @transform_4, window_bounds = array<i64: 1, 32>}, {transform_indices = @transform_5, window_bounds = array<i64: 2, 32>}]} {
    %c0 = arith.constant 0 : index
    %c0_0 = arith.constant 0 : index
    %0 = vector.load %arg1[%c0, %c0_0] : memref<16x1xi32, #tpu.memory_space<vmem>>, vector<16x1xi32>
    %1 = tpu.iota {dimensions = array<i32: 1>} : vector<16x128xi32>
    %2 = vector.broadcast %0 : vector<16x1xi32> to vector<16x128xi32>
    %3 = arith.cmpi eq, %1, %2 : vector<16x128xi32>
    %4 = arith.extui %3 : vector<16x128xi1> to vector<16x128xi32>
    %5 = arith.sitofp %4 : vector<16x128xi32> to vector<16x128xf32>
    %c0_1 = arith.constant 0 : index
    %c0_2 = arith.constant 0 : index
    %6 = vector.load %arg3[%c0_1, %c0_2] : memref<128x32xf32, #tpu.memory_space<vmem>>, vector<128x32xf32>
    %cst = arith.constant dense<0.000000e+00> : vector<16x32xf32>
    %7 = tpu.matmul %5, %6, %cst {dimension_numbers = #tpu.dot_dimension_numbers<[1], [0], [0], [1], [0, 0, 1, 1], [], []>} : vector<16x128xf32>, vector<128x32xf32>, vector<16x32xf32> -> vector<16x32xf32>
    %c0_3 = arith.constant 0 : index
    %c0_4 = arith.constant 0 : index
    %8 = vector.load %arg2[%c0_3, %c0_4] : memref<2x1xi32, #tpu.memory_space<vmem>>, vector<2x1xi32>
    %9 = tpu.iota {dimensions = array<i32: 1>} : vector<2x16xi32>
    %10 = tpu.iota {dimensions = array<i32: 0>} : vector<2x16xi32>
    %c8_i32 = arith.constant 8 : i32
    %11 = vector.broadcast %c8_i32 : i32 to vector<2x16xi32>
    %12 = arith.muli %10, %11 : vector<2x16xi32>
    %13 = arith.cmpi sge, %9, %12 : vector<2x16xi32>
    %c1_i32 = arith.constant 1 : i32
    %14 = vector.broadcast %c1_i32 : i32 to vector<2x16xi32>
    %15 = arith.addi %10, %14 : vector<2x16xi32>
    %c8_i32_5 = arith.constant 8 : i32
    %16 = vector.broadcast %c8_i32_5 : i32 to vector<2x16xi32>
    %17 = arith.muli %15, %16 : vector<2x16xi32>
    %18 = arith.cmpi slt, %9, %17 : vector<2x16xi32>
    %19 = arith.andi %13, %18 : vector<2x16xi1>
    %c8_i32_6 = arith.constant 8 : i32
    %20 = vector.broadcast %c8_i32_6 : i32 to vector<2x16xi32>
    %21 = arith.muli %10, %20 : vector<2x16xi32>
    %22 = arith.subi %9, %21 : vector<2x16xi32>
    %23 = vector.broadcast %8 : vector<2x1xi32> to vector<2x16xi32>
    %24 = arith.cmpi slt, %22, %23 : vector<2x16xi32>
    %25 = arith.andi %19, %24 : vector<2x16xi1>
    %c0_7 = arith.constant 0 : index
    %c0_8 = arith.constant 0 : index
    %26 = vector.load %arg4[%c0_7, %c0_8] : memref<32x32xf32, #tpu.memory_space<vmem>>, vector<32x32xf32>
    %c0_9 = arith.constant 0 : index
    %c0_10 = arith.constant 0 : index
    %27 = vector.load %arg5[%c0_9, %c0_10] : memref<1x32xf32, #tpu.memory_space<vmem>>, vector<1x32xf32>
    %cst_11 = arith.constant dense<0.000000e+00> : vector<16x32xf32>
    %28 = tpu.matmul %7, %26, %cst_11 {dimension_numbers = #tpu.dot_dimension_numbers<[1], [0], [0], [1], [0, 0, 1, 1], [], []>} : vector<16x32xf32>, vector<32x32xf32>, vector<16x32xf32> -> vector<16x32xf32>
    %29 = math.tanh %28 : vector<16x32xf32>
    %cst_12 = arith.constant dense<0.000000e+00> : vector<1x16xf32>
    %30 = tpu.matmul %27, %29, %cst_12 {dimension_numbers = #tpu.dot_dimension_numbers<[1], [1], [0], [0], [0, 0, 1, 0], [], []>} : vector<1x32xf32>, vector<16x32xf32>, vector<1x16xf32> -> vector<1x16xf32>
    %cst_13 = arith.constant -1.000000e+30 : f32
    %31 = vector.shape_cast %30 : vector<1x16xf32> to vector<1x16xf32>
    %32 = vector.broadcast %31 : vector<1x16xf32> to vector<2x16xf32>
    %33 = vector.broadcast %cst_13 : f32 to vector<2x16xf32>
    %34 = arith.select %25, %32, %33 : vector<2x16xi1>, vector<2x16xf32>
    %cst_14 = arith.constant dense<0xFF800000> : vector<2xf32>
    %35 = vector.multi_reduction <maximumf>, %34, %cst_14 [1] : vector<2x16xf32> to vector<2xf32>
    %36 = vector.shape_cast %35 : vector<2xf32> to vector<2x1xf32>
    %37 = vector.broadcast %36 : vector<2x1xf32> to vector<2x16xf32>
    %38 = arith.subf %34, %37 : vector<2x16xf32>
    %39 = math.exp %38 : vector<2x16xf32>
    %40 = arith.extui %25 : vector<2x16xi1> to vector<2x16xi32>
    %41 = arith.sitofp %40 : vector<2x16xi32> to vector<2x16xf32>
    %42 = arith.mulf %39, %41 : vector<2x16xf32>
    %cst_15 = arith.constant dense<0.000000e+00> : vector<2xf32>
    %43 = vector.multi_reduction <add>, %42, %cst_15 [1] : vector<2x16xf32> to vector<2xf32>
    %44 = vector.shape_cast %43 : vector<2xf32> to vector<2x1xf32>
    %cst_16 = arith.constant dense<0.000000e+00> : vector<2x32xf32>
    %45 = tpu.matmul %42, %7, %cst_16 {dimension_numbers = #tpu.dot_dimension_numbers<[1], [0], [0], [1], [0, 0, 1, 1], [], []>} : vector<2x16xf32>, vector<16x32xf32>, vector<2x32xf32> -> vector<2x32xf32>
    %cst_17 = arith.constant 0.000000e+00 : f32
    %46 = vector.broadcast %cst_17 : f32 to vector<2x1xf32>
    %47 = arith.cmpf ogt, %44, %46 : vector<2x1xf32>
    %cst_18 = arith.constant 0.000000e+00 : f32
    %48 = vector.broadcast %cst_18 : f32 to vector<2x1xf32>
    %49 = arith.cmpf ogt, %44, %48 : vector<2x1xf32>
    %cst_19 = arith.constant 1.000000e+00 : f32
    %50 = vector.broadcast %cst_19 : f32 to vector<2x1xf32>
    %51 = arith.select %49, %44, %50 : vector<2x1xi1>, vector<2x1xf32>
    %cst_20 = arith.constant 1.000000e+00 : f32
    %52 = vector.broadcast %cst_20 : f32 to vector<2x1xf32>
    %53 = arith.divf %52, %51 : vector<2x1xf32>
    %cst_21 = arith.constant 0.000000e+00 : f32
    %54 = vector.broadcast %cst_21 : f32 to vector<2x1xf32>
    %55 = arith.select %47, %53, %54 : vector<2x1xi1>, vector<2x1xf32>
    %56 = vector.broadcast %55 : vector<2x1xf32> to vector<2x32xf32>
    %57 = arith.mulf %45, %56 : vector<2x32xf32>
    %c0_22 = arith.constant 0 : index
    %c0_23 = arith.constant 0 : index
    %58 = vector.load %arg6[%c0_22, %c0_23] : memref<2x32xf32, #tpu.memory_space<vmem>>, vector<2x32xf32>
    tpu.vector_store %arg6[%c0_22, %c0_23], %57 {strides = array<i32>} : memref<2x32xf32, #tpu.memory_space<vmem>>, vector<2x32xf32>,
    return
  }
  func.func @transform_0(%arg0: i32) -> (i32, i32) {
    %c0_i32 = arith.constant 0 : i32
    %c0_i32_0 = arith.constant 0 : i32
    return %arg0, %c0_i32 : i32, i32
  }
  func.func @transform_1(%arg0: i32) -> (i32, i32) {
    %c0_i32 = arith.constant 0 : i32
    %c0_i32_0 = arith.constant 0 : i32
    return %arg0, %c0_i32 : i32, i32
  }
  func.func @transform_2(%arg0: i32) -> (i32, i32) {
    %c0_i32 = arith.constant 0 : i32
    %c0_i32_0 = arith.constant 0 : i32
    %c0_i32_1 = arith.constant 0 : i32
    return %c0_i32, %c0_i32_0 : i32, i32
  }
  func.func @transform_3(%arg0: i32) -> (i32, i32) {
    %c0_i32 = arith.constant 0 : i32
    %c0_i32_0 = arith.constant 0 : i32
    %c0_i32_1 = arith.constant 0 : i32
    return %c0_i32, %c0_i32_0 : i32, i32
  }
  func.func @transform_4(%arg0: i32) -> (i32, i32) {
    %c0_i32 = arith.constant 0 : i32
    %c0_i32_0 = arith.constant 0 : i32
    %c0_i32_1 = arith.constant 0 : i32
    return %c0_i32, %c0_i32_0 : i32, i32
  }
  func.func @transform_5(%arg0: i32) -> (i32, i32) {
    %c0_i32 = arith.constant 0 : i32
    %c0_i32_0 = arith.constant 0 : i32
    return %arg0, %c0_i32 : i32, i32
  }
}

module attributes {stable_mosaic.version = 11 : i64} {
  func.func @_output_logits_kernel(%arg0: i32, %arg1: memref<2x32xbf16, #tpu.memory_space<vmem>>, %arg2: memref<128x32xbf16, #tpu.memory_space<vmem>>, %arg3: memref<1x128xf32, #tpu.memory_space<vmem>>, %arg4: memref<2x128xf32, #tpu.memory_space<vmem>>) attributes {dimension_semantics = [#tpu.dimension_semantics<parallel>], iteration_bounds = array<i64: 1>, scalar_prefetch = 0 : i64, scratch_operands = 0 : i64, tpu.core_type = #tpu.core_type<tc>, window_params = [{pipeline_mode = #tpu.pipeline_mode<synchronous>, transform_indices = @transform_0, window_bounds = array<i64: 2, 32>}, {transform_indices = @transform_1, window_bounds = array<i64: 128, 32>}, {transform_indices = @transform_2, window_bounds = array<i64: 1, 128>}, {transform_indices = @transform_3, window_bounds = array<i64: 2, 128>}]} {
    %c0 = arith.constant 0 : index
    %c0_0 = arith.constant 0 : index
    %0 = vector.load %arg1[%c0, %c0_0] : memref<2x32xbf16, #tpu.memory_space<vmem>>, vector<2x32xbf16>
    %c0_1 = arith.constant 0 : index
    %c0_2 = arith.constant 0 : index
    %1 = vector.load %arg2[%c0_1, %c0_2] : memref<128x32xbf16, #tpu.memory_space<vmem>>, vector<128x32xbf16>
    %cst = arith.constant dense<0.000000e+00> : vector<2x128xf32>
    %2 = tpu.matmul %0, %1, %cst {dimension_numbers = #tpu.dot_dimension_numbers<[1], [1], [0], [0], [0, 0, 1, 0], [], []>} : vector<2x32xbf16>, vector<128x32xbf16>, vector<2x128xf32> -> vector<2x128xf32>
    %c0_3 = arith.constant 0 : index
    %c0_4 = arith.constant 0 : index
    %3 = vector.load %arg3[%c0_3, %c0_4] : memref<1x128xf32, #tpu.memory_space<vmem>>, vector<1x128xf32>
    %4 = vector.broadcast %3 : vector<1x128xf32> to vector<2x128xf32>
    %5 = arith.addf %2, %4 : vector<2x128xf32>
    %c0_5 = arith.constant 0 : index
    %c0_6 = arith.constant 0 : index
    %6 = vector.load %arg4[%c0_5, %c0_6] : memref<2x128xf32, #tpu.memory_space<vmem>>, vector<2x128xf32>
    tpu.vector_store %arg4[%c0_5, %c0_6], %5 {strides = array<i32>} : memref<2x128xf32, #tpu.memory_space<vmem>>, vector<2x128xf32>,
    return
  }
  func.func @transform_0(%arg0: i32) -> (i32, i32) {
    %c0_i32 = arith.constant 0 : i32
    %c0_i32_0 = arith.constant 0 : i32
    %c0_i32_1 = arith.constant 0 : i32
    return %c0_i32, %c0_i32_0 : i32, i32
  }
  func.func @transform_1(%arg0: i32) -> (i32, i32) {
    %c0_i32 = arith.constant 0 : i32
    %c0_i32_0 = arith.constant 0 : i32
    return %arg0, %c0_i32 : i32, i32
  }
  func.func @transform_2(%arg0: i32) -> (i32, i32) {
    %c0_i32 = arith.constant 0 : i32
    %c0_i32_0 = arith.constant 0 : i32
    return %c0_i32, %arg0 : i32, i32
  }
  func.func @transform_3(%arg0: i32) -> (i32, i32) {
    %c0_i32 = arith.constant 0 : i32
    %c0_i32_0 = arith.constant 0 : i32
    return %c0_i32, %arg0 : i32, i32
  }
}

</mosaic_0001>

<llo_original>
// kernel: kbrd_forward.3
$region0: #{kbrd_forward.3}
  #allocation0 [shape = 'u32[]', space=smem, size = 0x4, offset = 0x4, fixed_abs, tag = 'smem constant byte address 0x4 - core index']
  #allocation1 [shape = 'u32[144,128]{1,0:T(1,128)}', space=vmem, size = 0x12000, scoped, tag = 'internal scratch']
  %s0 = inlined_call_operand.vmem [shape: bf16[2,32], index: 0, kind: input, shape index: {}]
  %s1 = inlined_call_operand.vmem [shape: bf16[128,32], index: 1, kind: input, shape index: {}]
  %s2 = inlined_call_operand.vmem [shape: f32[1,128], index: 2, kind: input, shape index: {}]
  %s3 = inlined_call_operand.hbm [shape: f32[2,128], index: 3, kind: output, shape index: {}]
  %s4 = sld [smem:[#allocation0]]
  $region22: #{kbrd_forward.3} parent=0
    _
  %s6 = ssub.s32 1, %s4
  %s7 = scalar_select 0, %s6, %s4
  $region1: #{kbrd_forward.3} parent=0
    #allocation2 [shape = 'u8[1024]{0}', space=vmem, size = 0x400, scoped, tag = 'output window, operand 0, single buffered']
    #allocation3 [shape = 's32[1]{0}', space=sflag, size = 0x4, scoped, tag = 'scoped memory for kbrd_forward.3']
    %8 = vsyncpa [#allocation3], 0
    // Predicated region
    $region2: #{kbrd_forward.3} parent=1 // pred_check
      _
    $region3: #{kbrd_forward.3} parent=1 // pred_check_branch
      %10 = sbr.rel (0) target = $region5
    $region4: #{kbrd_forward.3} parent=1 // pred_region
      _
    $region5: #{kbrd_forward.3} parent=1 // pred_fallthru
      _
    // Predicated region
    $region6: #{kbrd_forward.3} parent=1 // pred_check
      _
    $region7: #{kbrd_forward.3} parent=1 // pred_check_branch
      %12 = sbr.rel (0) target = $region9
    $region8: #{kbrd_forward.3} parent=1 // pred_region
      _
    $region9: #{kbrd_forward.3} parent=1 // pred_fallthru
      _
    // Predicated region
    $region10: #{kbrd_forward.3} parent=1 // pred_check
      _
    $region11: #{kbrd_forward.3} parent=1 // pred_check_branch
      %14 = sbr.rel (0) target = $region13
    $region12: #{kbrd_forward.3} parent=1 // pred_region
      _
    $region13: #{kbrd_forward.3} parent=1 // pred_fallthru
      _
    %v16 = vld [vmem:[%s0] sm:$0x1]
    %v17 = vld [vmem:[%s1] sm:$0xf]
    %v18 = vld [vmem:[%s1 + $0x4] sm:$0xf]
    %v19 = vld [vmem:[%s1 + $0x8] sm:$0xf]
    %v20 = vld [vmem:[%s1 + $0xc] sm:$0xf]
    %v21 = vld [vmem:[%s1 + $0x10] sm:$0xf]
    %v22 = vld [vmem:[%s1 + $0x14] sm:$0xf]
    %v23 = vld [vmem:[%s1 + $0x18] sm:$0xf]
    %v24 = vld [vmem:[%s1 + $0x1c] sm:$0xf]
    %v25 = vld [vmem:[%s1 + $0x20] sm:$0xf]
    %v26 = vld [vmem:[%s1 + $0x24] sm:$0xf]
    %v27 = vld [vmem:[%s1 + $0x28] sm:$0xf]
    %v28 = vld [vmem:[%s1 + $0x2c] sm:$0xf]
    %v29 = vld [vmem:[%s1 + $0x30] sm:$0xf]
    %v30 = vld [vmem:[%s1 + $0x34] sm:$0xf]
    %v31 = vld [vmem:[%s1 + $0x38] sm:$0xf]
    %v32 = vld [vmem:[%s1 + $0x3c] sm:$0xf]
    %v33 = vld [vmem:[%s2] sm:$0x1]
    %v35 = vlaneseq
    %v36 = vshrl.u32 %v35, 7
    %v37 = vsub.s32 0, %v36
    %v38 = vrot.slane %v33, %v37
    %v56 = vunpack.c.l.b16 %v17
    %v57 = vunpack.c.l.b16 %v18
    %v58 = vunpack.c.l.b16 %v19
    %v59 = vunpack.c.l.b16 %v20
    %v60 = vunpack.c.l.b16 %v21
    %v61 = vunpack.c.l.b16 %v22
    %v62 = vunpack.c.l.b16 %v23
    %v63 = vunpack.c.l.b16 %v24
    %v64 = vunpack.c.l.b16 %v25
    %v65 = vunpack.c.l.b16 %v26
    %v66 = vunpack.c.l.b16 %v27
    %v67 = vunpack.c.l.b16 %v28
    %v68 = vunpack.c.l.b16 %v29
    %v69 = vunpack.c.l.b16 %v30
    %v70 = vunpack.c.l.b16 %v31
    %v71 = vunpack.c.l.b16 %v32
    %v72 = vpack.c.b16 %v57, %v56
    %v73 = vpack.c.b16 %v59, %v58
    %v74 = vpack.c.b16 %v61, %v60
    %v75 = vpack.c.b16 %v63, %v62
    %v76 = vpack.c.b16 %v65, %v64
    %v77 = vpack.c.b16 %v67, %v66
    %v78 = vpack.c.b16 %v69, %v68
    %v79 = vpack.c.b16 %v71, %v70
    %vm80 = vcmask 261120
    %v82 = vsel %vm80, %v16, 0
    %v85 = vsel %vm80, %v72, 0
    %v88 = vsel %vm80, %v73, 0
    %v91 = vsel %vm80, %v74, 0
    %v94 = vsel %vm80, %v75, 0
    %v97 = vsel %vm80, %v76, 0
    %v100 = vsel %vm80, %v77, 0
    %v103 = vsel %vm80, %v78, 0
    %v106 = vsel %vm80, %v79, 0
    %108 = vmatprep.subr.bf16.mxu0 0
    %109 = vmatpush1.bf16.xpose.msra.mxu0 %v85
    %110 = vmatprep.subr.bf16.mxu0 0
    %111 = vmatpush1.bf16.xpose.msra.mxu0 %v88
    %112 = vmatprep.subr.bf16.mxu0 0
    %113 = vmatpush1.bf16.xpose.msra.mxu0 %v91
    %114 = vmatprep.subr.bf16.mxu0 0
    %115 = vmatpush1.bf16.xpose.msra.mxu0 %v94
    %116 = vmatprep.subr.bf16.mxu0 0
    %117 = vmatpush1.bf16.xpose.msra.mxu0 %v97
    %118 = vmatprep.subr.bf16.mxu0 0
    %119 = vmatpush1.bf16.xpose.msra.mxu0 %v100
    %120 = vmatprep.subr.bf16.mxu0 0
    %121 = vmatpush1.bf16.xpose.msra.mxu0 %v103
    %122 = vmatprep.subr.bf16.mxu0 0
    %123 = vmatpush1.bf16.xpose.msra.mxu0 %v106
    %124 = vmatprep.subr.bf16.mxu0 0
    %125 = vmatpush1.bf16.xpose.msra.mxu0 0
    %126 = vmatprep.subr.bf16.mxu0 0
    %127 = vmatpush1.bf16.xpose.msra.mxu0 0
    %128 = vmatprep.subr.bf16.mxu0 0
    %129 = vmatpush1.bf16.xpose.msra.mxu0 0
    %130 = vmatprep.subr.bf16.mxu0 0
    %131 = vmatpush1.bf16.xpose.msra.mxu0 0
    %132 = vmatprep.subr.bf16.mxu0 0
    %133 = vmatpush1.bf16.xpose.msra.mxu0 0
    %134 = vmatprep.subr.bf16.mxu0 0
    %135 = vmatpush1.bf16.xpose.msra.mxu0 0
    %136 = vmatprep.subr.bf16.mxu0 0
    %137 = vmatpush1.bf16.xpose.msra.mxu0 0
    %138 = vmatprep.subr.bf16.mxu0 0
    %139 = vmatpush1.bf16.xpose.msra.mxu0 0
    %140 = vmatprep.mubr.bf16.mxu0 0
    %141 = vmatmul.mubr.bf16.gmra.mrb[0].mxu0 %v82
    %v142 = vpop.f32.mrb[0].mxu0
    %v143 = vadd.f32 %v38, %v142
    %v144 = vpop.f32.mrb[0].mxu0
    %v145 = vpop.f32.mrb[0].mxu0
    %v146 = vpop.f32.mrb[0].mxu0
    %147 = vdwg.mxu0
    %148 = vst [vmem:[#allocation2] sm:$0x3] %v143
    // Predicated region
    $region14: #{kbrd_forward.3} parent=1 // pred_check
      _
    $region15: #{kbrd_forward.3} parent=1 // pred_check_branch
      %150 = sbr.rel (0) target = $region17
    $region16: #{kbrd_forward.3} parent=1 // pred_region
      %s152 = ssub.s32 32, 32
      %153 = vsyncadd [#allocation3], %s152
      %s155 = sshll.u32 [#allocation2], 4
      %s156 = int_to_ptr.vmem [resolvable:$true] %s155
      %158 = dma.vmem_to_hbm [thread:$0]  %s156, 32, %s3, [#allocation3]
    $region17: #{kbrd_forward.3} parent=1 // pred_fallthru
      _
    // Predicated region
    $region18: #{kbrd_forward.3} parent=1 // pred_check
      _
    $region19: #{kbrd_forward.3} parent=1 // pred_check_branch
      %160 = sbr.rel (0) target = $region21
    $region20: #{kbrd_forward.3} parent=1 // pred_region
      %161 = dma.done [#allocation3], 32
    $region21: #{kbrd_forward.3} parent=1 // pred_fallthru
      _
    %162 = vsyncpa [#allocation3], 1

// kernel: kbrd_forward.2
$region0: #{kbrd_forward.2}
  #allocation0 [shape = 'u32[]', space=smem, size = 0x4, offset = 0x4, fixed_abs, tag = 'smem constant byte address 0x4 - core index']
  #allocation1 [shape = 'u32[144,128]{1,0:T(1,128)}', space=vmem, size = 0x12000, scoped, tag = 'internal scratch']
  %s0 = inlined_call_operand.vmem [shape: s32[16,1], index: 0, kind: input, shape index: {}]
  %s1 = inlined_call_operand.vmem [shape: s32[2,1], index: 1, kind: input, shape index: {}]
  %s2 = inlined_call_operand.vmem [shape: f32[128,32], index: 2, kind: input, shape index: {}]
  %s3 = inlined_call_operand.vmem [shape: f32[32,32], index: 3, kind: input, shape index: {}]
  %s4 = inlined_call_operand.vmem [shape: f32[1,32], index: 4, kind: input, shape index: {}]
  %s5 = inlined_call_operand.vmem [shape: f32[2,32], index: 5, kind: output, shape index: {}]
  %s6 = sld [smem:[#allocation0]]
  $region30: #{kbrd_forward.2} parent=0
    _
  %s8 = ssub.s32 1, %s6
  %s9 = scalar_select 0, %s8, %s6
  // Predicated region
  $region2: #{kbrd_forward.2} parent=0 // pred_check
    _
  $region3: #{kbrd_forward.2} parent=0 // pred_check_branch
    %11 = sbr.rel (0) target = $region5
  $region4: #{kbrd_forward.2} parent=0 // pred_region
    _
  $region5: #{kbrd_forward.2} parent=0 // pred_fallthru
    _
  // Predicated region
  $region6: #{kbrd_forward.2} parent=0 // pred_check
    _
  $region7: #{kbrd_forward.2} parent=0 // pred_check_branch
    %13 = sbr.rel (0) target = $region9
  $region8: #{kbrd_forward.2} parent=0 // pred_region
    _
  $region9: #{kbrd_forward.2} parent=0 // pred_fallthru
    _
  // Predicated region
  $region10: #{kbrd_forward.2} parent=0 // pred_check
    _
  $region11: #{kbrd_forward.2} parent=0 // pred_check_branch
    %15 = sbr.rel (0) target = $region13
  $region12: #{kbrd_forward.2} parent=0 // pred_region
    _
  $region13: #{kbrd_forward.2} parent=0 // pred_fallthru
    _
  // Predicated region
  $region14: #{kbrd_forward.2} parent=0 // pred_check
    _
  $region15: #{kbrd_forward.2} parent=0 // pred_check_branch
    %17 = sbr.rel (0) target = $region17
  $region16: #{kbrd_forward.2} parent=0 // pred_region
    _
  $region17: #{kbrd_forward.2} parent=0 // pred_fallthru
    _
  // Predicated region
  $region18: #{kbrd_forward.2} parent=0 // pred_check
    _
  $region19: #{kbrd_forward.2} parent=0 // pred_check_branch
    %19 = sbr.rel (0) target = $region21
  $region20: #{kbrd_forward.2} parent=0 // pred_region
    _
  $region21: #{kbrd_forward.2} parent=0 // pred_fallthru
    _
  %v20 = vld [vmem:[%s0] sm:$0xff]
  %v21 = vld [vmem:[%s0 + $0x8] sm:$0xff]
  %v22 = vlaneseq
  %v23 = vand.u32 %v22, 127
  %24 = vset.pattern.permute.xlu0 0
  %25 = vperm.xlu0 %24, %v20
  %v26 = vpop.permute.xlu0 %25
  %27 = vset.pattern.permute.xlu0 0
  %28 = vperm.xlu0 %27, %v21
  %v29 = vpop.permute.xlu0 %28
  %vm30 = vcmp.eq.s32.totalorder %v23, %v26
  %vm31 = vcmp.eq.s32.totalorder %v23, %v29
  %v32 = vsel %vm30, 1, 0
  %v33 = vsel %vm31, 1, 0
  %v34 = vcvt.s32.f32 %v32
  %v35 = vcvt.s32.f32 %v33
  %v36 = vld [vmem:[%s2] sm:$0xff]
  %v37 = vld [vmem:[%s2 + $0x8] sm:$0xff]
  %v38 = vld [vmem:[%s2 + $0x10] sm:$0xff]
  %v39 = vld [vmem:[%s2 + $0x18] sm:$0xff]
  %v40 = vld [vmem:[%s2 + $0x20] sm:$0xff]
  %v41 = vld [vmem:[%s2 + $0x28] sm:$0xff]
  %v42 = vld [vmem:[%s2 + $0x30] sm:$0xff]
  %v43 = vld [vmem:[%s2 + $0x38] sm:$0xff]
  %v44 = vld [vmem:[%s2 + $0x40] sm:$0xff]
  %v45 = vld [vmem:[%s2 + $0x48] sm:$0xff]
  %v46 = vld [vmem:[%s2 + $0x50] sm:$0xff]
  %v47 = vld [vmem:[%s2 + $0x58] sm:$0xff]
  %v48 = vld [vmem:[%s2 + $0x60] sm:$0xff]
  %v49 = vld [vmem:[%s2 + $0x68] sm:$0xff]
  %v50 = vld [vmem:[%s2 + $0x70] sm:$0xff]
  %v51 = vld [vmem:[%s2 + $0x78] sm:$0xff]
  %52 = vmatprep.subr.mxu0 0.0
  %53 = vmatpush1.msra.mxu0 %v36
  %54 = vmatprep.subr.mxu0 0.0
  %55 = vmatpush1.msra.mxu0 %v37
  %56 = vmatprep.subr.mxu0 0.0
  %57 = vmatpush1.msra.mxu0 %v38
  %58 = vmatprep.subr.mxu0 0.0
  %59 = vmatpush1.msra.mxu0 %v39
  %60 = vmatprep.subr.mxu0 0.0
  %61 = vmatpush1.msra.mxu0 %v40
  %62 = vmatprep.subr.mxu0 0.0
  %63 = vmatpush1.msra.mxu0 %v41
  %64 = vmatprep.subr.mxu0 0.0
  %65 = vmatpush1.msra.mxu0 %v42
  %66 = vmatprep.subr.mxu0 0.0
  %67 = vmatpush1.msra.mxu0 %v43
  %68 = vmatprep.subr.mxu0 0.0
  %69 = vmatpush1.msra.mxu0 %v44
  %70 = vmatprep.subr.mxu0 0.0
  %71 = vmatpush1.msra.mxu0 %v45
  %72 = vmatprep.subr.mxu0 0.0
  %73 = vmatpush1.msra.mxu0 %v46
  %74 = vmatprep.subr.mxu0 0.0
  %75 = vmatpush1.msra.mxu0 %v47
  %76 = vmatprep.subr.mxu0 0.0
  %77 = vmatpush1.msra.mxu0 %v48
  %78 = vmatprep.subr.mxu0 0.0
  %79 = vmatpush1.msra.mxu0 %v49
  %80 = vmatprep.subr.mxu0 0.0
  %81 = vmatpush1.msra.mxu0 %v50
  %82 = vmatprep.subr.mxu0 0.0
  %83 = vmatpush1.msra.mxu0 %v51
  %84 = vmatprep.subr.mxu0 0.0
  %85 = vmatpush1.msra.mxu0 0.0
  %86 = vmatprep.subr.mxu0 0.0
  %87 = vmatpush1.msra.mxu0 0.0
  %88 = vmatprep.subr.mxu0 0.0
  %89 = vmatpush1.msra.mxu0 0.0
  %90 = vmatprep.subr.mxu0 0.0
  %91 = vmatpush1.msra.mxu0 0.0
  %92 = vmatprep.subr.mxu0 0.0
  %93 = vmatpush1.msra.mxu0 0.0
  %94 = vmatprep.subr.mxu0 0.0
  %95 = vmatpush1.msra.mxu0 0.0
  %96 = vmatprep.subr.mxu0 0.0
  %97 = vmatpush1.msra.mxu0 0.0
  %98 = vmatprep.subr.mxu0 0.0
  %99 = vmatpush1.msra.mxu0 0.0
  %100 = vmatprep.subr.mxu0 0.0
  %101 = vmatpush1.msra.mxu0 0.0
  %102 = vmatprep.subr.mxu0 0.0
  %103 = vmatpush1.msra.mxu0 0.0
  %104 = vmatprep.subr.mxu0 0.0
  %105 = vmatpush1.msra.mxu0 0.0
  %106 = vmatprep.subr.mxu0 0.0
  %107 = vmatpush1.msra.mxu0 0.0
  %108 = vmatprep.subr.mxu0 0.0
  %109 = vmatpush1.msra.mxu0 0.0
  %110 = vmatprep.subr.mxu0 0.0
  %111 = vmatpush1.msra.mxu0 0.0
  %112 = vmatprep.subr.mxu0 0.0
  %113 = vmatpush1.msra.mxu0 0.0
  %114 = vmatprep.subr.mxu0 0.0
  %115 = vmatpush1.msra.mxu0 0.0
  %116 = vmatprep.mubr.f32.mxu0 0.0
  %117 = vmatmul.mubr.f32.gmra.mrb[0].mxu0 %v34
  %v118 = vpop.f32.mrb[0].mxu0
  %v119 = vadd.f32 0.0, %v118
  %v120 = vpop.f32.mrb[0].mxu0
  %121 = vmatprep.mubr.f32.mxu0 0.0
  %122 = vmatmul.mubr.f32.gmra.mrb[0].mxu0 %v35
  %v123 = vpop.f32.mrb[0].mxu0
  %v124 = vadd.f32 0.0, %v123
  %v125 = vpop.f32.mrb[0].mxu0
  %126 = vdwg.mxu0
  %v127 = vld [vmem:[%s1] sm:$0x3]
  %v128 = vlaneseq
  %v129 = vshrl.u32 %v128, 7
  %v130 = vmul.u32 %v129, 8
  %vm131 = vcmp.ge.s32.totalorder %v23, %v130
  %v132 = vadd.s32 %v129, 1
  %v133 = vmul.u32 %v132, 8
  %vm134 = vcmp.lt.s32.totalorder %v23, %v133
  %vm135 = vmand %vm131, %vm134
  %v136 = vsub.s32 %v23, %v130
  %137 = vset.pattern.permute.xlu0 0
  %138 = vperm.xlu0 %137, %v127
  %v139 = vpop.permute.xlu0 %138
  %vm140 = vcmp.lt.s32.totalorder %v136, %v139
  %vm141 = vmand %vm135, %vm140
  %v142 = vld [vmem:[%s3] sm:$0xff]
  %v143 = vld [vmem:[%s3 + $0x8] sm:$0xff]
  %v144 = vld [vmem:[%s3 + $0x10] sm:$0xff]
  %v145 = vld [vmem:[%s3 + $0x18] sm:$0xff]
  %v146 = vld [vmem:[%s4] sm:$0x1]
  %vm147 = vcmask 261120
  %v149 = vsel %vm147, %v119, 0
  %v152 = vsel %vm147, %v124, 0
  %154 = vmatprep.subr.mxu0 0.0
  %155 = vmatpush1.msra.mxu0 %v142
  %156 = vmatprep.subr.mxu0 0.0
  %157 = vmatpush1.msra.mxu0 %v143
  %158 = vmatprep.subr.mxu0 0.0
  %159 = vmatpush1.msra.mxu0 %v144
  %160 = vmatprep.subr.mxu0 0.0
  %161 = vmatpush1.msra.mxu0 %v145
  %162 = vmatprep.subr.mxu0 0.0
  %163 = vmatpush1.msra.mxu0 0.0
  %164 = vmatprep.subr.mxu0 0.0
  %165 = vmatpush1.msra.mxu0 0.0
  %166 = vmatprep.subr.mxu0 0.0
  %167 = vmatpush1.msra.mxu0 0.0
  %168 = vmatprep.subr.mxu0 0.0
  %169 = vmatpush1.msra.mxu0 0.0
  %170 = vmatprep.subr.mxu0 0.0
  %171 = vmatpush1.msra.mxu0 0.0
  %172 = vmatprep.subr.mxu0 0.0
  %173 = vmatpush1.msra.mxu0 0.0
  %174 = vmatprep.subr.mxu0 0.0
  %175 = vmatpush1.msra.mxu0 0.0
  %176 = vmatprep.subr.mxu0 0.0
  %177 = vmatpush1.msra.mxu0 0.0
  %178 = vmatprep.subr.mxu0 0.0
  %179 = vmatpush1.msra.mxu0 0.0
  %180 = vmatprep.subr.mxu0 0.0
  %181 = vmatpush1.msra.mxu0 0.0
  %182 = vmatprep.subr.mxu0 0.0
  %183 = vmatpush1.msra.mxu0 0.0
  %184 = vmatprep.subr.mxu0 0.0
  %185 = vmatpush1.msra.mxu0 0.0
  %186 = vmatprep.subr.mxu0 0.0
  %187 = vmatpush1.msra.mxu0 0.0
  %188 = vmatprep.subr.mxu0 0.0
  %189 = vmatpush1.msra.mxu0 0.0
  %190 = vmatprep.subr.mxu0 0.0
  %191 = vmatpush1.msra.mxu0 0.0
  %192 = vmatprep.subr.mxu0 0.0
  %193 = vmatpush1.msra.mxu0 0.0
  %194 = vmatprep.subr.mxu0 0.0
  %195 = vmatpush1.msra.mxu0 0.0
  %196 = vmatprep.subr.mxu0 0.0
  %197 = vmatpush1.msra.mxu0 0.0
  %198 = vmatprep.subr.mxu0 0.0
  %199 = vmatpush1.msra.mxu0 0.0
  %200 = vmatprep.subr.mxu0 0.0
  %201 = vmatpush1.msra.mxu0 0.0
  %202 = vmatprep.subr.mxu0 0.0
  %203 = vmatpush1.msra.mxu0 0.0
  %204 = vmatprep.subr.mxu0 0.0
  %205 = vmatpush1.msra.mxu0 0.0
  %206 = vmatprep.subr.mxu0 0.0
  %207 = vmatpush1.msra.mxu0 0.0
  %208 = vmatprep.subr.mxu0 0.0
  %209 = vmatpush1.msra.mxu0 0.0
  %210 = vmatprep.subr.mxu0 0.0
  %211 = vmatpush1.msra.mxu0 0.0
  %212 = vmatprep.subr.mxu0 0.0
  %213 = vmatpush1.msra.mxu0 0.0
  %214 = vmatprep.subr.mxu0 0.0
  %215 = vmatpush1.msra.mxu0 0.0
  %216 = vmatprep.subr.mxu0 0.0
  %217 = vmatpush1.msra.mxu0 0.0
  %218 = vmatprep.mubr.f32.mxu0 0.0
  %219 = vmatmul.mubr.f32.gmra.mrb[0].mxu0 %v149
  %v220 = vpop.f32.mrb[0].mxu0
  %v221 = vadd.f32 0.0, %v220
  %v222 = vpop.f32.mrb[0].mxu0
  %223 = vmatprep.mubr.f32.mxu0 0.0
  %224 = vmatmul.mubr.f32.gmra.mrb[0].mxu0 %v152
  %v225 = vpop.f32.mrb[0].mxu0
  %v226 = vadd.f32 0.0, %v225
  %v227 = vpop.f32.mrb[0].mxu0
  %228 = vdwg.mxu0
  %v229 = vtanh.pop %v221
  %v230 = vtanh.pop %v226
  %v232 = vsel %vm147, %v146, 0
  %v235 = vsel %vm147, %v229, 0
  %v238 = vsel %vm147, %v230, 0
  %240 = vmatprep.subr.mxu0 0.0
  %241 = vmatpush1.xpose.msra.mxu0 %v235
  %242 = vmatprep.subr.mxu0 0.0
  %243 = vmatpush1.xpose.msra.mxu0 %v238
  %244 = vmatprep.subr.mxu0 0.0
  %245 = vmatpush1.xpose.msra.mxu0 0.0
  %246 = vmatprep.subr.mxu0 0.0
  %247 = vmatpush1.xpose.msra.mxu0 0.0
  %248 = vmatprep.subr.mxu0 0.0
  %249 = vmatpush1.xpose.msra.mxu0 0.0
  %250 = vmatprep.subr.mxu0 0.0
  %251 = vmatpush1.xpose.msra.mxu0 0.0
  %252 = vmatprep.subr.mxu0 0.0
  %253 = vmatpush1.xpose.msra.mxu0 0.0
  %254 = vmatprep.subr.mxu0 0.0
  %255 = vmatpush1.xpose.msra.mxu0 0.0
  %256 = vmatprep.subr.mxu0 0.0
  %257 = vmatpush1.xpose.msra.mxu0 0.0
  %258 = vmatprep.subr.mxu0 0.0
  %259 = vmatpush1.xpose.msra.mxu0 0.0
  %260 = vmatprep.subr.mxu0 0.0
  %261 = vmatpush1.xpose.msra.mxu0 0.0
  %262 = vmatprep.subr.mxu0 0.0
  %263 = vmatpush1.xpose.msra.mxu0 0.0
  %264 = vmatprep.subr.mxu0 0.0
  %265 = vmatpush1.xpose.msra.mxu0 0.0
  %266 = vmatprep.subr.mxu0 0.0
  %267 = vmatpush1.xpose.msra.mxu0 0.0
  %268 = vmatprep.subr.mxu0 0.0
  %269 = vmatpush1.xpose.msra.mxu0 0.0
  %270 = vmatprep.subr.mxu0 0.0
  %271 = vmatpush1.xpose.msra.mxu0 0.0
  %272 = vmatprep.subr.mxu0 0.0
  %273 = vmatpush1.xpose.msra.mxu0 0.0
  %274 = vmatprep.subr.mxu0 0.0
  %275 = vmatpush1.xpose.msra.mxu0 0.0
  %276 = vmatprep.subr.mxu0 0.0
  %277 = vmatpush1.xpose.msra.mxu0 0.0
  %278 = vmatprep.subr.mxu0 0.0
  %279 = vmatpush1.xpose.msra.mxu0 0.0
  %280 = vmatprep.subr.mxu0 0.0
  %281 = vmatpush1.xpose.msra.mxu0 0.0
  %282 = vmatprep.subr.mxu0 0.0
  %283 = vmatpush1.xpose.msra.mxu0 0.0
  %284 = vmatprep.subr.mxu0 0.0
  %285 = vmatpush1.xpose.msra.mxu0 0.0
  %286 = vmatprep.subr.mxu0 0.0
  %287 = vmatpush1.xpose.msra.mxu0 0.0
  %288 = vmatprep.subr.mxu0 0.0
  %289 = vmatpush1.xpose.msra.mxu0 0.0
  %290 = vmatprep.subr.mxu0 0.0
  %291 = vmatpush1.xpose.msra.mxu0 0.0
  %292 = vmatprep.subr.mxu0 0.0
  %293 = vmatpush1.xpose.msra.mxu0 0.0
  %294 = vmatprep.subr.mxu0 0.0
  %295 = vmatpush1.xpose.msra.mxu0 0.0
  %296 = vmatprep.subr.mxu0 0.0
  %297 = vmatpush1.xpose.msra.mxu0 0.0
  %298 = vmatprep.subr.mxu0 0.0
  %299 = vmatpush1.xpose.msra.mxu0 0.0
  %300 = vmatprep.subr.mxu0 0.0
  %301 = vmatpush1.xpose.msra.mxu0 0.0
  %302 = vmatprep.subr.mxu0 0.0
  %303 = vmatpush1.xpose.msra.mxu0 0.0
  %304 = vmatprep.mubr.f32.mxu0 0.0
  %305 = vmatmul.mubr.f32.gmra.mrb[0].mxu0 %v232
  %v306 = vpop.f32.mrb[0].mxu0
  %v307 = vadd.f32 0.0, %v306
  %v308 = vpop.f32.mrb[0].mxu0
  %309 = vdwg.mxu0
  %v310 = vlaneseq
  %v311 = vshrl.u32 %v310, 7
  %v312 = vsub.s32 0, %v311
  %v313 = vrot.slane %v307, %v312
  %v314 = vsel %vm141, %v313, -1e+30
  %vm315 = vcmask 123904
  %v316 = vsel %vm315, %v314, -inf
  %317 = vmax.xlane.f32.xlu0 %v316
  %v318 = vpop.xlane.xlu0 %317
  %v319 = vsub.f32 %v314, %v318
  %v320 = vmul.f32 %v319, 1.442695
  %v321 = vpow.pop %v320
  %v322 = vsel %vm141, 1, 0
  %v323 = vcvt.s32.f32 %v322
  %v324 = vmul.f32 %v321, %v323
  %v325 = vsel %vm315, %v324, 0.0
  %326 = vadd.xlane.f32.xlu0 %v325
  %v327 = vpop.xlane.xlu0 %326
  %vm328 = vcmask 130048
  %v330 = vsel %vm328, %v324, 0
  %332 = vmatprep.subr.mxu0 0.0
  %333 = vmatpush1.msra.mxu0 %v119
  %334 = vmatprep.subr.mxu0 0.0
  %335 = vmatpush1.msra.mxu0 %v124
  %336 = vmatprep.subr.mxu0 0.0
  %337 = vmatpush1.msra.mxu0 0.0
  %338 = vmatprep.subr.mxu0 0.0
  %339 = vmatpush1.msra.mxu0 0.0
  %340 = vmatprep.subr.mxu0 0.0
  %341 = vmatpush1.msra.mxu0 0.0
  %342 = vmatprep.subr.mxu0 0.0
  %343 = vmatpush1.msra.mxu0 0.0
  %344 = vmatprep.subr.mxu0 0.0
  %345 = vmatpush1.msra.mxu0 0.0
  %346 = vmatprep.subr.mxu0 0.0
  %347 = vmatpush1.msra.mxu0 0.0
  %348 = vmatprep.subr.mxu0 0.0
  %349 = vmatpush1.msra.mxu0 0.0
  %350 = vmatprep.subr.mxu0 0.0
  %351 = vmatpush1.msra.mxu0 0.0
  %352 = vmatprep.subr.mxu0 0.0
  %353 = vmatpush1.msra.mxu0 0.0
  %354 = vmatprep.subr.mxu0 0.0
  %355 = vmatpush1.msra.mxu0 0.0
  %356 = vmatprep.subr.mxu0 0.0
  %357 = vmatpush1.msra.mxu0 0.0
  %358 = vmatprep.subr.mxu0 0.0
  %359 = vmatpush1.msra.mxu0 0.0
  %360 = vmatprep.subr.mxu0 0.0
  %361 = vmatpush1.msra.mxu0 0.0
  %362 = vmatprep.subr.mxu0 0.0
  %363 = vmatpush1.msra.mxu0 0.0
  %364 = vmatprep.subr.mxu0 0.0
  %365 = vmatpush1.msra.mxu0 0.0
  %366 = vmatprep.subr.mxu0 0.0
  %367 = vmatpush1.msra.mxu0 0.0
  %368 = vmatprep.subr.mxu0 0.0
  %369 = vmatpush1.msra.mxu0 0.0
  %370 = vmatprep.subr.mxu0 0.0
  %371 = vmatpush1.msra.mxu0 0.0
  %372 = vmatprep.subr.mxu0 0.0
  %373 = vmatpush1.msra.mxu0 0.0
  %374 = vmatprep.subr.mxu0 0.0
  %375 = vmatpush1.msra.mxu0 0.0
  %376 = vmatprep.subr.mxu0 0.0
  %377 = vmatpush1.msra.mxu0 0.0
  %378 = vmatprep.subr.mxu0 0.0
  %379 = vmatpush1.msra.mxu0 0.0
  %380 = vmatprep.subr.mxu0 0.0
  %381 = vmatpush1.msra.mxu0 0.0
  %382 = vmatprep.subr.mxu0 0.0
  %383 = vmatpush1.msra.mxu0 0.0
  %384 = vmatprep.subr.mxu0 0.0
  %385 = vmatpush1.msra.mxu0 0.0
  %386 = vmatprep.subr.mxu0 0.0
  %387 = vmatpush1.msra.mxu0 0.0
  %388 = vmatprep.subr.mxu0 0.0
  %389 = vmatpush1.msra.mxu0 0.0
  %390 = vmatprep.subr.mxu0 0.0
  %391 = vmatpush1.msra.mxu0 0.0
  %392 = vmatprep.subr.mxu0 0.0
  %393 = vmatpush1.msra.mxu0 0.0
  %394 = vmatprep.subr.mxu0 0.0
  %395 = vmatpush1.msra.mxu0 0.0
  %396 = vmatprep.mubr.f32.mxu0 0.0
  %397 = vmatmul.mubr.f32.gmra.mrb[0].mxu0 %v330
  %v398 = vpop.f32.mrb[0].mxu0
  %v399 = vadd.f32 0.0, %v398
  %v400 = vpop.f32.mrb[0].mxu0
  %401 = vdwg.mxu0
  %vm402 = vcmp.gt.f32.partialorder %v327, 0.0
  %v403 = vsel %vm402, %v327, 1.0
  %v404 = vrcp.pop %v403
  %v405 = vmul.f32 1.0, %v404
  %v406 = vsel %vm402, %v405, 0.0
  %v407 = vmul.f32 %v399, %v406
  %vm408 = vcmask 254976
  %409 = vst.msk [vmem:[%s5] sm:$0x3] %vm408, %v407
  // Predicated region
  $region22: #{kbrd_forward.2} parent=0 // pred_check
    _
  $region23: #{kbrd_forward.2} parent=0 // pred_check_branch
    %411 = sbr.rel (0) target = $region25
  $region24: #{kbrd_forward.2} parent=0 // pred_region
    _
  $region25: #{kbrd_forward.2} parent=0 // pred_fallthru
    _
  // Predicated region
  $region26: #{kbrd_forward.2} parent=0 // pred_check
    _
  $region27: #{kbrd_forward.2} parent=0 // pred_check_branch
    %413 = sbr.rel (0) target = $region29
  $region28: #{kbrd_forward.2} parent=0 // pred_region
    _
  $region29: #{kbrd_forward.2} parent=0 // pred_fallthru
    _

</llo_original>
